<compile_context>
chip_gen: v7x
topology: tpu7x:2x2x1
jax: 0.10.0
libtpu: 0.0.40
codegen_flags: <defaults>
</compile_context>

<pallas_src>
import functools

import jax
import jax.numpy as jnp
from jax.experimental import pallas as pl
from jax.experimental.pallas import tpu as pltpu

_LANES = 128


def _sublane_multiple(dtype) -> int:
    """Minimum second-minor tile multiple for a dtype (packed sublanes)."""
    itemsize = jnp.dtype(dtype).itemsize
    if itemsize >= 4:
        return 8
    if itemsize == 2:
        return 16
    return 32  # int8 / fp8


def _tpu_generation() -> int:
    """Best-effort TPU generation (5/6/7) from device_kind; 0 if unknown."""
    kind = ""
    try:
        kind = jax.devices()[0].device_kind.lower()
    except Exception:
        pass
    for g in (7, 6, 5, 4):
        if f"v{g}" in kind:
            return g
    return 0


def _block_policy(gen: int):
    """(num_tensorcores, target_block_bytes, blocks_per_core, min_block_bytes)."""
    if gen >= 7:
        # 2 TCs share the parallel grid axis: give each core several blocks so
        # DMA-in / compute / DMA-out overlap per core; ~2 MiB blocks amortize
        # the ~0.35 us per-step overhead at 3.2 TB/s.
        return 2, 2 << 20, 4, 256 << 10
    if gen == 6:
        return 1, 2 << 20, 2, 256 << 10
    # v5e / unknown: 1 MiB blocks already hide per-step overhead at 0.82 TB/s
    # and keep double-buffered VMEM (~4 MiB) far under the 16 MiB default.
    return 1, 1 << 20, 2, 256 << 10


def _mish_kernel(x_ref, o_ref, *, native_bf16: bool):
    x = x_ref[...]
    if native_bf16:
        # bf16-native path (v6e/v7x): bf16 VPU/EUP, halves issues per element.
        t = jnp.exp(jnp.minimum(x, 20.0))
        n = t * (t + 2.0)
        y = jnp.where(x > 20.0, x, x * (n / (n + 2.0)))
        o_ref[...] = y.astype(o_ref.dtype)
        return

    xf = x.astype(jnp.float32)
    # mish(x) = x * tanh(softplus(x)).  With t = exp(x), n = t*(t+2):
    #   tanh(log1p(t)) = ((1+t)^2 - 1) / ((1+t)^2 + 1) = n / (n + 2)
    # -> one EUP transcendental (exp) instead of three (exp, log1p, tanh).
    # For x > 20 tanh(softplus(x)) == 1 in f32, so mish(x) == x; the clamp
    # also keeps exp / n finite.
    t = jnp.exp(jnp.minimum(xf, 20.0))
    n = t * (t + 2.0)
    d = n + 2.0  # d >= 2, never near zero.
    # Approx EUP reciprocal + two Newton-Raphson refinements (VPU filler in a
    # DMA-bound kernel) -> full f32 accuracy without tanh/log1p.  On v7x the
    # second NR step could be dropped (re-validate tails first).
    inv = pl.reciprocal(d, approx=True)
    inv = inv * (2.0 - d * inv)
    inv = inv * (2.0 - d * inv)
    y = jnp.where(xf > 20.0, xf, xf * n * inv)
    o_ref[...] = y.astype(o_ref.dtype)


def _mish_jnp(x):
    """Plain-jnp fallback (tiny tensors / <128-element ragged tail)."""
    xf = x.astype(jnp.float32)
    return (xf * jnp.tanh(jax.nn.softplus(xf))).astype(x.dtype)


def _mish_slab(slab, *, tr: int, native_bf16: bool):
    rows, _ = slab.shape
    itemsize = jnp.dtype(slab.dtype).itemsize
    n_elems = rows * _LANES
    kernel = functools.partial(_mish_kernel, native_bf16=native_bf16)
    return pl.pallas_call(
        kernel,
        out_shape=jax.ShapeDtypeStruct((rows, _LANES), slab.dtype),
        grid_spec=pltpu.PrefetchScalarGridSpec(
            num_scalar_prefetch=0,
            grid=(pl.cdiv(rows, tr),),
            in_specs=[pl.BlockSpec((tr, _LANES), lambda i: (i, 0))],
            out_specs=pl.BlockSpec((tr, _LANES), lambda i: (i, 0)),
        ),
        compiler_params=pltpu.CompilerParams(
            dimension_semantics=("parallel",),
        ),
        cost_estimate=pl.CostEstimate(
            flops=14 * n_elems,
            transcendentals=2 * n_elems,
            bytes_accessed=2 * n_elems * itemsize,
        ),
    )(slab)


@jax.jit
def mish(x: jax.Array) -> jax.Array:
    """Elementwise Mish via Pallas. Works for any input shape/dtype."""
    orig_shape = x.shape
    dtype = x.dtype
    itemsize = jnp.dtype(dtype).itemsize
    sub = _sublane_multiple(dtype)
    gen = _tpu_generation()
    native_bf16 = (dtype == jnp.bfloat16) and gen >= 6

    n = x.size
    # Tiny tensors (< one aligned tile): kernel launch overhead dominates.
    if n < sub * _LANES:
        return _mish_jnp(x)

    flat = x.reshape(-1)
    # Only lane divisibility is required; the ragged <128-element tail (if
    # any) is handled with plain jnp instead of a full-tensor pad/slice.
    n_main = (n // _LANES) * _LANES
    rows = n_main // _LANES

    # --- per-generation block-size / grid-length policy -------------------
    num_tc, block_bytes, blocks_per_core, min_block_bytes = _block_policy(gen)
    bytes_per_row = _LANES * itemsize
    desired_blocks = num_tc * blocks_per_core

    tr_cap = max(sub, (block_bytes // bytes_per_row) // sub * sub)
    tr_split = -(-rows // desired_blocks)  # balanced split across the grid
    tr_split = ((tr_split + sub - 1) // sub) * sub
    tr_floor = max(sub, (min_block_bytes // bytes_per_row) // sub * sub)

    tr = min(tr_cap, max(sub, tr_split))
    tr = max(tr, tr_floor)
    if tr >= rows:
        tr = rows  # single full-extent block (always a valid block shape)

    main_slab = flat[:n_main].reshape(rows, _LANES) if n_main != n else flat.reshape(rows, _LANES)
    out_main = _mish_slab(main_slab, tr=tr, native_bf16=native_bf16)

    if n_main == n:
        return out_main.reshape(orig_shape)

    tail = _mish_jnp(flat[n_main:])  # < 128 elements
    return jnp.concatenate([out_main.reshape(-1), tail]).reshape(orig_shape)


def mish_ref(x):
    xf = x.astype(jnp.float32)
    return (xf * jnp.tanh(jax.nn.softplus(xf))).astype(x.dtype)


if __name__ == "__main__":
    key = jax.random.PRNGKey(0)

    # Primary test: lane-aligned NCHW activation (exercises the Pallas path).
    x = jax.random.normal(key, (2, 4, 16, 16), dtype=jnp.float32) * 3.0
    y = mish(x)
    jax.block_until_ready(y)
    y_ref = mish_ref(x)
    assert y.shape == x.shape and y.dtype == x.dtype
    assert jnp.allclose(y, y_ref, atol=1e-5, rtol=1e-5), "mismatch vs reference"

    # Secondary test: ragged element count (aligned prefix + jnp tail path).
    x2 = jax.random.normal(jax.random.PRNGKey(1), (5, 461), dtype=jnp.float32) * 3.0
    y2 = mish(x2)
    jax.block_until_ready(y2)
    assert jnp.allclose(y2, mish_ref(x2), atol=1e-5, rtol=1e-5), "ragged mismatch"

    print("KERNEL_OK")
</pallas_src>

<mosaic_0001>
module attributes {stable_mosaic.version = 11 : i64} {
  func.func @_mish_kernel(%arg0: i32, %arg1: memref<16x128xf32, #tpu.memory_space<vmem>>, %arg2: memref<16x128xf32, #tpu.memory_space<vmem>>) attributes {dimension_semantics = [#tpu.dimension_semantics<parallel>], iteration_bounds = array<i64: 1>, scalar_prefetch = 0 : i64, scratch_operands = 0 : i64, tpu.core_type = #tpu.core_type<tc>, window_params = [{transform_indices = @transform_0, window_bounds = array<i64: 16, 128>}, {transform_indices = @transform_1, window_bounds = array<i64: 16, 128>}]} {
    %c0 = arith.constant 0 : index
    %c0_0 = arith.constant 0 : index
    %0 = vector.load %arg1[%c0, %c0_0] : memref<16x128xf32, #tpu.memory_space<vmem>>, vector<16x128xf32>
    %cst = arith.constant 2.000000e+01 : f32
    %1 = vector.broadcast %cst : f32 to vector<16x128xf32>
    %2 = arith.minimumf %0, %1 : vector<16x128xf32>
    %3 = math.exp %2 : vector<16x128xf32>
    %cst_1 = arith.constant 2.000000e+00 : f32
    %4 = vector.broadcast %cst_1 : f32 to vector<16x128xf32>
    %5 = arith.addf %3, %4 : vector<16x128xf32>
    %6 = arith.mulf %3, %5 : vector<16x128xf32>
    %cst_2 = arith.constant 2.000000e+00 : f32
    %7 = vector.broadcast %cst_2 : f32 to vector<16x128xf32>
    %8 = arith.addf %6, %7 : vector<16x128xf32>
    %9 = tpu.reciprocal %8 {approx = true} : vector<16x128xf32> -> vector<16x128xf32>
    %10 = arith.mulf %8, %9 : vector<16x128xf32>
    %cst_3 = arith.constant 2.000000e+00 : f32
    %11 = vector.broadcast %cst_3 : f32 to vector<16x128xf32>
    %12 = arith.subf %11, %10 : vector<16x128xf32>
    %13 = arith.mulf %9, %12 : vector<16x128xf32>
    %14 = arith.mulf %8, %13 : vector<16x128xf32>
    %cst_4 = arith.constant 2.000000e+00 : f32
    %15 = vector.broadcast %cst_4 : f32 to vector<16x128xf32>
    %16 = arith.subf %15, %14 : vector<16x128xf32>
    %17 = arith.mulf %13, %16 : vector<16x128xf32>
    %cst_5 = arith.constant 2.000000e+01 : f32
    %18 = vector.broadcast %cst_5 : f32 to vector<16x128xf32>
    %19 = arith.cmpf ogt, %0, %18 : vector<16x128xf32>
    %20 = arith.mulf %0, %6 : vector<16x128xf32>
    %21 = arith.mulf %20, %17 : vector<16x128xf32>
    %22 = arith.select %19, %0, %21 : vector<16x128xi1>, vector<16x128xf32>
    %c0_6 = arith.constant 0 : index
    %c0_7 = arith.constant 0 : index
    %23 = vector.load %arg2[%c0_6, %c0_7] : memref<16x128xf32, #tpu.memory_space<vmem>>, vector<16x128xf32>
    tpu.vector_store %arg2[%c0_6, %c0_7], %22 {strides = array<i32>} : memref<16x128xf32, #tpu.memory_space<vmem>>, vector<16x128xf32>,
    return
  }
  func.func @transform_0(%arg0: i32) -> (i32, i32) {
    %c0_i32 = arith.constant 0 : i32
    %c0_i32_0 = arith.constant 0 : i32
    return %arg0, %c0_i32 : i32, i32
  }
  func.func @transform_1(%arg0: i32) -> (i32, i32) {
    %c0_i32 = arith.constant 0 : i32
    %c0_i32_0 = arith.constant 0 : i32
    return %arg0, %c0_i32 : i32, i32
  }
}

</mosaic_0001>

<llo_original>
// kernel: mish.1
$region0: #{mish.1}
  #allocation0 [shape = 'u32[]', space=smem, size = 0x4, offset = 0x4, fixed_abs, tag = 'smem constant byte address 0x4 - core index']
  #allocation1 [shape = 'u32[144,128]{1,0:T(1,128)}', space=vmem, size = 0x12000, scoped, tag = 'internal scratch']
  %s0 = inlined_call_operand.vmem [shape: f32[16,128], index: 0, kind: input, shape index: {}]
  %s1 = inlined_call_operand.vmem [shape: f32[16,128], index: 1, kind: output, shape index: {}]
  %s2 = sld [smem:[#allocation0]]
  $region14: #{mish.1} parent=0
    _
  %s4 = ssub.s32 1, %s2
  %s5 = scalar_select 0, %s4, %s2
  // Predicated region
  $region2: #{mish.1} parent=0 // pred_check
    _
  $region3: #{mish.1} parent=0 // pred_check_branch
    %7 = sbr.rel (0) target = $region5
  $region4: #{mish.1} parent=0 // pred_region
    _
  $region5: #{mish.1} parent=0 // pred_fallthru
    _
  %v8 = vld [vmem:[%s0] sm:$0xff]
  %v9 = vld [vmem:[%s0 + $0x8] sm:$0xff]
  %v10 = vmin.f32 %v8, 20.0
  %v11 = vmin.f32 %v9, 20.0
  %v12 = vmul.f32 %v10, 1.442695
  %v13 = vpow.pop %v12
  %v14 = vmul.f32 %v11, 1.442695
  %v15 = vpow.pop %v14
  %v16 = vadd.f32 %v13, 2.0
  %v17 = vadd.f32 %v15, 2.0
  %v18 = vmul.f32 %v13, %v16
  %v19 = vmul.f32 %v15, %v17
  %v20 = vadd.f32 %v18, 2.0
  %v21 = vadd.f32 %v19, 2.0
  %v22 = vrcp.pop %v20
  %v23 = vrcp.pop %v21
  %v24 = vmul.f32 %v20, %v22
  %v25 = vmul.f32 %v21, %v23
  %v26 = vsub.f32 2.0, %v24
  %v27 = vsub.f32 2.0, %v25
  %v28 = vmul.f32 %v22, %v26
  %v29 = vmul.f32 %v23, %v27
  %v30 = vmul.f32 %v20, %v28
  %v31 = vmul.f32 %v21, %v29
  %v32 = vsub.f32 2.0, %v30
  %v33 = vsub.f32 2.0, %v31
  %v34 = vmul.f32 %v28, %v32
  %v35 = vmul.f32 %v29, %v33
  %vm36 = vcmp.gt.f32.partialorder %v8, 20.0
  %vm37 = vcmp.gt.f32.partialorder %v9, 20.0
  %v38 = vmul.f32 %v8, %v18
  %v39 = vmul.f32 %v9, %v19
  %v40 = vmul.f32 %v38, %v34
  %v41 = vmul.f32 %v39, %v35
  %v42 = vsel %vm36, %v8, %v40
  %v43 = vsel %vm37, %v9, %v41
  %44 = vst [vmem:[%s1] sm:$0xff] %v42
  %45 = vst [vmem:[%s1 + $0x8] sm:$0xff] %v43
  // Predicated region
  $region6: #{mish.1} parent=0 // pred_check
    _
  $region7: #{mish.1} parent=0 // pred_check_branch
    %47 = sbr.rel (0) target = $region9
  $region8: #{mish.1} parent=0 // pred_region
    _
  $region9: #{mish.1} parent=0 // pred_fallthru
    _
  // Predicated region
  $region10: #{mish.1} parent=0 // pred_check
    _
  $region11: #{mish.1} parent=0 // pred_check_branch
    %49 = sbr.rel (0) target = $region13
  $region12: #{mish.1} parent=0 // pred_region
    _
  $region13: #{mish.1} parent=0 // pred_fallthru
    _

</llo_original>
